<compile_context>
chip_gen: v6e
topology: v6e:2x2x1
jax: 0.10.0
libtpu: 0.0.40
codegen_flags: <defaults>
</compile_context>

<pallas_src>
import functools
import numpy as np

import jax
import jax.numpy as jnp
from jax.experimental import pallas as pl
from jax.experimental.pallas import tpu as pltpu


VMEM_LIMIT = 64 * 1024 * 1024   # raise scoped VMEM on the per-image kernels (v5e default 16MiB)


def _pick_tile(m, target):
    """Largest row tile <= target that divides m (prefer multiples of 8)."""
    if m <= target:
        return m
    t = (target // 8) * 8
    while t >= 8:
        if m % t == 0:
            return t
        t -= 8
    for t in range(target, 0, -1):       # TODO(synk): pad/mask ragged tails instead
        if m % t == 0:
            return t
    return m


# --------------------------------------------------------------------------------------
# Pallas kernels
# --------------------------------------------------------------------------------------

def _pw_kernel(x_ref, w_ref, s_ref, b_ref, o_ref, *, act):
    """1x1 conv (bf16 MXU matmul) + folded BN (+ ReLU)."""
    y = jnp.dot(x_ref[...].astype(jnp.bfloat16), w_ref[...],
                preferred_element_type=jnp.float32)
    y = y * s_ref[...] + b_ref[...]
    if act == "relu":
        y = jnp.maximum(y, 0.0)
    o_ref[...] = y.astype(o_ref.dtype)


def pointwise(x2d, w, scale, bias, *, act="none", out_dtype=jnp.float32, row_tile=1024):
    M, Cin = x2d.shape
    Cout = w.shape[1]
    tm = _pick_tile(M, row_tile)
    return pl.pallas_call(
        functools.partial(_pw_kernel, act=act),
        grid=(M // tm,),
        in_specs=[
            pl.BlockSpec((tm, Cin), lambda i: (i, 0)),
            pl.BlockSpec((Cin, Cout), lambda i: (0, 0)),
            pl.BlockSpec((1, Cout), lambda i: (0, 0)),
            pl.BlockSpec((1, Cout), lambda i: (0, 0)),
        ],
        out_specs=pl.BlockSpec((tm, Cout), lambda i: (i, 0)),
        out_shape=jax.ShapeDtypeStruct((M, Cout), out_dtype),
        compiler_params=pltpu.CompilerParams(dimension_semantics=("parallel",)),
    )(x2d, w, scale.reshape(1, Cout), bias.reshape(1, Cout))


def _embed_kernel(x_ref, k_ref, wx_ref, wk_ref, s1_ref, b1_ref, w2_ref, b2_ref, o_ref):
    """Fused embed chain: e1 = ReLU(BN(x@Wx + k@Wk)); e2 = e1@W2 + bias.
    W2 columns are pre-permuted to tap-major channel order; e1 never hits HBM."""
    e1 = jnp.dot(x_ref[...].astype(jnp.bfloat16), wx_ref[...],
                 preferred_element_type=jnp.float32)
    e1 = e1 + jnp.dot(k_ref[...].astype(jnp.bfloat16), wk_ref[...],
                      preferred_element_type=jnp.float32)
    e1 = jnp.maximum(e1 * s1_ref[...] + b1_ref[...], 0.0)
    e2 = jnp.dot(e1.astype(jnp.bfloat16), w2_ref[...],
                 preferred_element_type=jnp.float32)
    o_ref[...] = (e2 + b2_ref[...]).astype(o_ref.dtype)


def embed_fused(x2d, k2d, wx, wk, s1, b1, w2, b2, *, row_tile=1024):
    M, dim = x2d.shape
    dmid = wx.shape[1]
    Cout = w2.shape[1]
    tm = _pick_tile(M, row_tile)
    return pl.pallas_call(
        _embed_kernel,
        grid=(M // tm,),
        in_specs=[
            pl.BlockSpec((tm, dim), lambda i: (i, 0)),
            pl.BlockSpec((tm, dim), lambda i: (i, 0)),
            pl.BlockSpec((dim, dmid), lambda i: (0, 0)),
            pl.BlockSpec((dim, dmid), lambda i: (0, 0)),
            pl.BlockSpec((1, dmid), lambda i: (0, 0)),
            pl.BlockSpec((1, dmid), lambda i: (0, 0)),
            pl.BlockSpec((dmid, Cout), lambda i: (0, 0)),
            pl.BlockSpec((1, Cout), lambda i: (0, 0)),
        ],
        out_specs=pl.BlockSpec((tm, Cout), lambda i: (i, 0)),
        out_shape=jax.ShapeDtypeStruct((M, Cout), jnp.bfloat16),
        compiler_params=pltpu.CompilerParams(dimension_semantics=("parallel",)),
    )(x2d, k2d, wx, wk, s1.reshape(1, dmid), b1.reshape(1, dmid), w2, b2.reshape(1, Cout))


def _key_embed_kernel(x_ref, w_ref, s_ref, b_ref, k_ref, ksum_ref, xpad_ref):
    """Grouped 3x3 same-padding conv + folded BN + ReLU.
    Zero-padding happens in a VMEM scratch (no wrapper jnp.pad), the 9 taps are folded
    into the matmul K dimension (one im2col matmul per group), the full-width result is
    stored with ONE lane-dense store, and the per-image channel sums of k (for the
    split-attention GAP) are an epilogue output."""
    _, H, W, dim = k_ref.shape
    groups, _, gc = w_ref.shape

    # zero-pad the input into the VMEM scratch
    xpad_ref[...] = jnp.zeros_like(xpad_ref)
    xpad_ref[1:H + 1, 1:W + 1, :] = x_ref[0].astype(jnp.float32)
    xp = xpad_ref[...]

    outs = []
    for g in range(groups):
        cols = [xp[kh:kh + H, kw:kw + W, g * gc:(g + 1) * gc].reshape(H * W, gc)
                for kh in range(3) for kw in range(3)]
        patches = jnp.concatenate(cols, axis=-1).astype(jnp.bfloat16)   # (H*W, 9*gc)
        outs.append(jnp.dot(patches, w_ref[g], preferred_element_type=jnp.float32))
    y = jnp.concatenate(outs, axis=-1)                                   # (H*W, dim)
    y = jnp.maximum(y * s_ref[...] + b_ref[...], 0.0)
    k_ref[0] = y.reshape(H, W, dim).astype(k_ref.dtype)
    ksum_ref[0] = jnp.sum(y, axis=0, keepdims=True)


def key_embed_bn_relu(x, w_g, scale, bias):
    B, H, W, dim = x.shape
    groups, kgc, gc = w_g.shape
    return pl.pallas_call(
        _key_embed_kernel,
        grid=(B,),
        in_specs=[
            pl.BlockSpec((1, H, W, dim), lambda b: (b, 0, 0, 0)),
            pl.BlockSpec((groups, kgc, gc), lambda b: (0, 0, 0)),
            pl.BlockSpec((1, dim), lambda b: (0, 0)),
            pl.BlockSpec((1, dim), lambda b: (0, 0)),
        ],
        out_specs=(pl.BlockSpec((1, H, W, dim), lambda b: (b, 0, 0, 0)),
                   pl.BlockSpec((1, 1, dim), lambda b: (b, 0, 0))),
        out_shape=(jax.ShapeDtypeStruct((B, H, W, dim), jnp.bfloat16),
                   jax.ShapeDtypeStruct((B, 1, dim), jnp.float32)),
        scratch_shapes=[pltpu.VMEM((H + 2, W + 2, dim), jnp.float32)],
        compiler_params=pltpu.CompilerParams(
            dimension_semantics=("parallel",),
            vmem_limit_bytes=VMEM_LIMIT),
    )(x, w_g, scale.reshape(1, dim), bias.reshape(1, dim))


def _cot_agg_kernel(x_ref, e_ref, ge_ref, get_ref, gg_ref, gb_ref,
                    cvw_ref, cvs_ref, cvb_ref, bns_ref, bnb_ref,
                    xl_ref, xsum_ref, vpad_ref, *, share, eps):
    """Fused CoT middle section, one image per grid step:
       GroupNorm(e2) -> aggregation weights (tap-major, contiguous lane slice per tap)
       v = x @ cv_w (+BN)         (value 1x1 conv computed in-kernel; v never hits HBM)
       LocalConvolution (share_planes replication in VMEM) + BN + SiLU
       + per-image channel sums for the split-attention GAP."""
    _, H, W, dim = xl_ref.shape
    C9 = e_ref.shape[3]                       # 9 * WC, tap-major channel order
    WC = C9 // 9
    n = float(H * W * 9)                      # elements per GroupNorm group

    # ---- GroupNorm (two-pass, centered) entirely in VMEM ----
    e = e_ref[0].astype(jnp.float32).reshape(H * W, C9)
    csum = jnp.sum(e, axis=0, keepdims=True)                                    # (1, C9)
    mean_g = jnp.dot(csum, ge_ref[...], preferred_element_type=jnp.float32) * (1.0 / n)
    mean_c = jnp.dot(mean_g, get_ref[...], preferred_element_type=jnp.float32)  # (1, C9)
    d = e - mean_c
    var_g = jnp.dot(jnp.sum(d * d, axis=0, keepdims=True), ge_ref[...],
                    preferred_element_type=jnp.float32) * (1.0 / n)
    rstd_c = jnp.dot(jax.lax.rsqrt(var_g + eps), get_ref[...],
                     preferred_element_type=jnp.float32)
    w_gn = (d * rstd_c * gg_ref[...] + gb_ref[...]).reshape(H, W, C9)

    # ---- value path: 1x1 conv + BN (bf16 MXU, f32 accumulate) ----
    v = jnp.dot(x_ref[0].reshape(H * W, dim), cvw_ref[...],
                preferred_element_type=jnp.float32)
    v = v * cvs_ref[...] + cvb_ref[...]

    # zero-pad v into the VMEM scratch (no HBM halo pass)
    vpad_ref[...] = jnp.zeros_like(vpad_ref)
    vpad_ref[1:H + 1, 1:W + 1, :] = v.reshape(H, W, dim)
    vp = vpad_ref[...]

    # ---- LocalConvolution: out channel c uses weight channel (c % WC) ----
    acc = jnp.zeros((H, W, dim), jnp.float32)
    for kh in range(3):
        for kw in range(3):
            kk = kh * 3 + kw
            w_tap = w_gn[:, :, kk * WC:(kk + 1) * WC]      # contiguous (tap-major) lane slice
            if share == 1:
                w_full = w_tap
            elif WC == 1:
                w_full = jnp.broadcast_to(w_tap, (H, W, dim))
            else:
                # TODO(synk): the per-tap lane replication materializes a (H,W,dim) copy.
                w_full = jnp.concatenate([w_tap] * share, axis=-1)
            acc = acc + w_full * vp[kh:kh + H, kw:kw + W, :]

    y = acc * bns_ref[0] + bnb_ref[0]
    y = y * jax.nn.sigmoid(y)                              # swish / SiLU
    xl_ref[0] = y.astype(xl_ref.dtype)
    xsum_ref[0] = jnp.sum(y, axis=(0, 1)).reshape(1, dim)


def cot_aggregate(x, e2, gn_e, gn_et, gn_g, gn_b, cv_w, cv_s, cv_b, bn_s, bn_b,
                  *, share, eps=1e-5):
    B, H, W, dim = x.shape
    C9 = e2.shape[3]
    WC = C9 // 9
    return pl.pallas_call(
        functools.partial(_cot_agg_kernel, share=share, eps=eps),
        grid=(B,),
        in_specs=[
            pl.BlockSpec((1, H, W, dim), lambda b: (b, 0, 0, 0)),   # conv1 output
            pl.BlockSpec((1, H, W, C9), lambda b: (b, 0, 0, 0)),    # embed output (tap-major)
            pl.BlockSpec((C9, WC), lambda b: (0, 0)),               # group indicator
            pl.BlockSpec((WC, C9), lambda b: (0, 0)),               # indicator transpose
            pl.BlockSpec((1, C9), lambda b: (0, 0)),                # GN gamma (tap-major)
            pl.BlockSpec((1, C9), lambda b: (0, 0)),                # GN beta  (tap-major)
            pl.BlockSpec((dim, dim), lambda b: (0, 0)),             # value conv weight
            pl.BlockSpec((1, dim), lambda b: (0, 0)),
            pl.BlockSpec((1, dim), lambda b: (0, 0)),
            pl.BlockSpec((1, dim), lambda b: (0, 0)),               # bn scale
            pl.BlockSpec((1, dim), lambda b: (0, 0)),               # bn bias
        ],
        out_specs=(pl.BlockSpec((1, H, W, dim), lambda b: (b, 0, 0, 0)),
                   pl.BlockSpec((1, 1, dim), lambda b: (b, 0, 0))),
        out_shape=(jax.ShapeDtypeStruct((B, H, W, dim), jnp.bfloat16),
                   jax.ShapeDtypeStruct((B, 1, dim), jnp.float32)),
        scratch_shapes=[pltpu.VMEM((H + 2, W + 2, dim), jnp.float32)],
        compiler_params=pltpu.CompilerParams(
            dimension_semantics=("parallel",),
            vmem_limit_bytes=VMEM_LIMIT),
    )(x, e2, gn_e, gn_et, gn_g.reshape(1, C9), gn_b.reshape(1, C9),
      cv_w, cv_s.reshape(1, dim), cv_b.reshape(1, dim),
      bn_s.reshape(1, dim), bn_b.reshape(1, dim))


def _se_kernel(ks_ref, xs_ref, w1_ref, s1_ref, b1_ref, w2_ref, b2_ref,
               a0_ref, a1_ref, *, inv_hw):
    """Fused split-attention tail: GAP scale, se1 (+BN+ReLU), se2 (+bias), radix-2 softmax.
    se2 columns are radix-major so the two softmax halves are contiguous lane slices."""
    B, _, dim = a0_ref.shape
    gap = (ks_ref[...] + xs_ref[...]).reshape(B, dim) * inv_hw
    a = jnp.dot(gap.astype(jnp.bfloat16), w1_ref[...], preferred_element_type=jnp.float32)
    a = jnp.maximum(a * s1_ref[...] + b1_ref[...], 0.0)
    att = jnp.dot(a.astype(jnp.bfloat16), w2_ref[...], preferred_element_type=jnp.float32)
    att = att + b2_ref[...]
    x0 = att[:, :dim]
    x1 = att[:, dim:]
    m = jnp.maximum(x0, x1)
    e0 = jnp.exp(x0 - m)
    e1 = jnp.exp(x1 - m)
    inv = 1.0 / (e0 + e1)
    a0_ref[...] = (e0 * inv).reshape(B, 1, dim)
    a1_ref[...] = (e1 * inv).reshape(B, 1, dim)


def se_attention(ksum, xlsum, w1, s1, b1, w2, b2, *, inv_hw):
    B, _, dim = ksum.shape
    attn_chs = w1.shape[1]
    return pl.pallas_call(
        functools.partial(_se_kernel, inv_hw=inv_hw),
        grid=(1,),
        in_specs=[
            pl.BlockSpec((B, 1, dim), lambda i: (0, 0, 0)),
            pl.BlockSpec((B, 1, dim), lambda i: (0, 0, 0)),
            pl.BlockSpec((dim, attn_chs), lambda i: (0, 0)),
            pl.BlockSpec((1, attn_chs), lambda i: (0, 0)),
            pl.BlockSpec((1, attn_chs), lambda i: (0, 0)),
            pl.BlockSpec((attn_chs, 2 * dim), lambda i: (0, 0)),
            pl.BlockSpec((1, 2 * dim), lambda i: (0, 0)),
        ],
        out_specs=(pl.BlockSpec((B, 1, dim), lambda i: (0, 0, 0)),
                   pl.BlockSpec((B, 1, dim), lambda i: (0, 0, 0))),
        out_shape=(jax.ShapeDtypeStruct((B, 1, dim), jnp.float32),
                   jax.ShapeDtypeStruct((B, 1, dim), jnp.float32)),
    )(ksum, xlsum, w1, s1.reshape(1, attn_chs), b1.reshape(1, attn_chs),
      w2, b2.reshape(1, 2 * dim))


def _conv3_kernel(xl_ref, k_ref, a0_ref, a1_ref, r_ref, w_ref, s_ref, b_ref, o_ref):
    """Fused tail: radix-2 split-attention combine + 1x1 conv3 (bf16 MXU) + bn3
    + identity residual + ReLU."""
    comb = (xl_ref[0].astype(jnp.float32) * a0_ref[0]
            + k_ref[0].astype(jnp.float32) * a1_ref[0])
    y = jnp.dot(comb.astype(jnp.bfloat16), w_ref[...],
                preferred_element_type=jnp.float32)
    y = y * s_ref[...] + b_ref[...] + r_ref[0]
    o_ref[0] = jnp.maximum(y, 0.0)


def conv3_bn_res_relu(xl, k, a0, a1, res, w, scale, bias, *, row_tile=1024):
    B, HW, dim = xl.shape
    Cin = res.shape[2]
    Cout = w.shape[1]
    assert Cin == Cout, "identity residual requires inplanes == planes * 4"
    tsp = _pick_tile(HW, row_tile)
    return pl.pallas_call(
        _conv3_kernel,
        grid=(B, HW // tsp),
        in_specs=[
            pl.BlockSpec((1, tsp, dim), lambda b, i: (b, i, 0)),
            pl.BlockSpec((1, tsp, dim), lambda b, i: (b, i, 0)),
            pl.BlockSpec((1, 1, dim), lambda b, i: (b, 0, 0)),
            pl.BlockSpec((1, 1, dim), lambda b, i: (b, 0, 0)),
            pl.BlockSpec((1, tsp, Cin), lambda b, i: (b, i, 0)),
            pl.BlockSpec((dim, Cout), lambda b, i: (0, 0)),
            pl.BlockSpec((1, Cout), lambda b, i: (0, 0)),
            pl.BlockSpec((1, Cout), lambda b, i: (0, 0)),
        ],
        out_specs=pl.BlockSpec((1, tsp, Cout), lambda b, i: (b, i, 0)),
        out_shape=jax.ShapeDtypeStruct((B, HW, Cout), jnp.float32),
        compiler_params=pltpu.CompilerParams(
            dimension_semantics=("parallel", "parallel")),
    )(xl, k, a0, a1, res, w, scale.reshape(1, Cout), bias.reshape(1, Cout))


# --------------------------------------------------------------------------------------
# Forward pass (glue in plain JAX, compute in the Pallas kernels above)
# --------------------------------------------------------------------------------------

def cot_bottleneck_forward(x_nchw, p, *, share_planes=8):
    x = jnp.transpose(x_nchw, (0, 2, 3, 1)).astype(jnp.float32)     # NCHW -> NHWC
    B, H, W, Cin = x.shape
    dim = p['conv1_w'].shape[1]
    outplanes = p['conv3_w'].shape[1]
    WC = dim // share_planes

    # conv1 (1x1) + bn1 + relu -> bf16
    h = pointwise(x.reshape(B * H * W, Cin), p['conv1_w'], p['bn1_s'], p['bn1_b'],
                  act='relu', out_dtype=jnp.bfloat16).reshape(B, H, W, dim)

    # key_embed: grouped 3x3 conv + BN + ReLU (fused GAP partial sum, in-kernel padding)
    k, ksum = key_embed_bn_relu(h, p['ke_w'], p['ke_s'], p['ke_b'])

    # embed(cat[x, k]) fused; output channels already tap-major (no HBM transpose later)
    e2 = embed_fused(h.reshape(-1, dim), k.reshape(-1, dim),
                     p['emb1_wx'], p['emb1_wk'], p['emb1_s'], p['emb1_b'],
                     p['emb2_w_k'], p['emb2_b_k']).reshape(B, H, W, 9 * WC)

    # GroupNorm + value conv + LocalConvolution + BN + SiLU + GAP partial sum, one kernel
    xl, xlsum = cot_aggregate(h, e2, p['gn_e'], p['gn_et'], p['gn_g_k'], p['gn_b_k'],
                              p['cv_w'], p['cv_s'], p['cv_b'], p['bn_s'], p['bn_b'],
                              share=share_planes)

    # split-attention (radix=2) tail
    a0, a1 = se_attention(ksum, xlsum, p['se1_w'], p['se1_s'], p['se1_b'],
                          p['se2_w_k'], p['se2_b_k'], inv_hw=1.0 / (H * W))

    # radix combine + conv3 (1x1) + bn3 + residual add + relu
    out = conv3_bn_res_relu(xl.reshape(B, H * W, dim), k.reshape(B, H * W, dim),
                            a0, a1, x.reshape(B, H * W, Cin),
                            p['conv3_w'], p['bn3_s'], p['bn3_b'])
    return jnp.transpose(out.reshape(B, H, W, outplanes), (0, 3, 1, 2))     # back to NCHW


# --------------------------------------------------------------------------------------
# Pure-JAX reference (same math / same bf16 rounding points, no Pallas)
# --------------------------------------------------------------------------------------

def reference_forward(x_nchw, p):
    x = jnp.transpose(x_nchw, (0, 2, 3, 1)).astype(jnp.float32)
    B, H, W, Cin = x.shape
    dim = p['conv1_w'].shape[1]
    share = 8
    WC = dim // share
    groups = p['ke_w'].shape[0]
    gc = dim // groups

    def bfdot(a, w):
        return jnp.dot(a.astype(jnp.bfloat16), w, preferred_element_type=jnp.float32)

    def r16(a):   # bf16 storage rounding of large intermediates (matches the kernels)
        return a.astype(jnp.bfloat16).astype(jnp.float32)

    residual = x
    h = r16(jnp.maximum(bfdot(x.reshape(-1, Cin), p['conv1_w']) * p['bn1_s'] + p['bn1_b'],
                        0.0)).reshape(B, H, W, dim)

    # key_embed: grouped 3x3 conv + BN + ReLU
    xpad = jnp.pad(h, ((0, 0), (1, 1), (1, 1), (0, 0)))
    k_parts = []
    for g in range(groups):
        acc = jnp.zeros((B, H, W, gc), jnp.float32)
        for kh in range(3):
            for kw in range(3):
                t = kh * 3 + kw
                w_t = p['ke_w'][g, t * gc:(t + 1) * gc, :]
                patch = xpad[:, kh:kh + H, kw:kw + W, g * gc:(g + 1) * gc]
                acc = acc + jnp.einsum('bhwi,io->bhwo', patch.astype(jnp.bfloat16),
                                       w_t, preferred_element_type=jnp.float32)
        k_parts.append(acc)
    k_f = jnp.maximum(jnp.concatenate(k_parts, axis=-1) * p['ke_s'] + p['ke_b'], 0.0)
    k = r16(k_f)

    # embed
    x2d = h.reshape(-1, dim)
    k2d = k.reshape(-1, dim)
    e1 = jnp.maximum((bfdot(x2d, p['emb1_wx']) + bfdot(k2d, p['emb1_wk']))
                     * p['emb1_s'] + p['emb1_b'], 0.0)
    e2 = r16(bfdot(e1, p['emb2_w']) + p['emb2_b']).reshape(B, H, W, 9 * WC)

    # GroupNorm (original wc-major channel order, groups of 9 consecutive channels)
    eg = e2.reshape(B, H, W, WC, 9)
    m = eg.mean(axis=(1, 2, 4), keepdims=True)
    var = jnp.square(eg - m).mean(axis=(1, 2, 4), keepdims=True)
    w_gn = ((eg - m) / jnp.sqrt(var + 1e-5)).reshape(B, H, W, 9 * WC) * p['gn_g'] + p['gn_b']

    # value path
    v = (bfdot(x2d, p['cv_w']) * p['cv_s'] + p['cv_b']).reshape(B, H, W, dim)

    # LocalConvolution (out channel c uses weight channel c % WC)
    w_resh = w_gn.reshape(B, H, W, WC, 9)
    w_exp = jnp.take(w_resh, jnp.arange(dim) % WC, axis=3)      # (B, H, W, dim, 9)
    vpad = jnp.pad(v, ((0, 0), (1, 1), (1, 1), (0, 0)))
    agg = jnp.zeros((B, H, W, dim), jnp.float32)
    for kh in range(3):
        for kw in range(3):
            agg = agg + w_exp[..., kh * 3 + kw] * vpad[:, kh:kh + H, kw:kw + W, :]
    y = agg * p['bn_s'] + p['bn_b']
    xl_f = y * jax.nn.sigmoid(y)
    xl = r16(xl_f)

    # split attention
    gap = (xl_f + k_f).mean(axis=(1, 2))
    a = jnp.maximum(bfdot(gap, p['se1_w']) * p['se1_s'] + p['se1_b'], 0.0)
    a = bfdot(a, p['se2_w']) + p['se2_b']
    attn = jax.nn.softmax(a.reshape(B, dim, 2), axis=2)
    comb = (xl * attn[:, :, 0][:, None, None, :]
            + k * attn[:, :, 1][:, None, None, :])

    out = bfdot(comb.reshape(-1, dim), p['conv3_w']) * p['bn3_s'] + p['bn3_b']
    out = jnp.maximum(out + residual.reshape(-1, Cin), 0.0).reshape(B, H, W, Cin)
    return jnp.transpose(out, (0, 3, 1, 2))


# --------------------------------------------------------------------------------------
# Deterministic synthetic parameters (shapes follow the PyTorch __init__)
# --------------------------------------------------------------------------------------

def init_params(key, inplanes, planes):
    width = planes                       # base_width=64, cardinality=1, reduce_first=1
    dim = width
    outplanes = planes * 4
    share_planes = 8
    WC = dim // share_planes
    C9 = 9 * WC
    attn_chs = max(dim * 2 // 4, 32)
    groups = 4
    gc = dim // groups

    it = iter(jax.random.split(key, 64))

    def nk():
        return next(it)

    def nrm(shape, scale=0.15):
        return scale * jax.random.normal(nk(), shape, dtype=jnp.float32)

    def bn_fold(C, eps=1e-5):
        gamma = 1.0 + 0.1 * jax.random.normal(nk(), (C,), dtype=jnp.float32)
        beta = 0.1 * jax.random.normal(nk(), (C,), dtype=jnp.float32)
        mean = 0.1 * jax.random.normal(nk(), (C,), dtype=jnp.float32)
        var = 0.9 + 0.2 * jax.random.uniform(nk(), (C,), dtype=jnp.float32)
        s = gamma * jax.lax.rsqrt(var + eps)
        return s, beta - mean * s

    def bf16(a):
        return a.astype(jnp.bfloat16)

    p = {}
    # conv1 / bn1
    p['conv1_w'] = bf16(nrm((inplanes, width)))
    p['bn1_s'], p['bn1_b'] = bn_fold(width)

    # CoTLayer.key_embed: Conv2d(dim, dim, 3, padding=1, groups=4, bias=False) + BN
    wg = nrm((dim, gc, 3, 3))                                    # (out, in-per-group, kh, kw)
    blocks = []
    for g in range(groups):
        blk = wg[g * gc:(g + 1) * gc]                            # (gc_out, gc_in, 3, 3)
        blk = jnp.transpose(blk, (2, 3, 1, 0)).reshape(9 * gc, gc)   # rows = tap*gc + ci
        blocks.append(blk)
    p['ke_w'] = bf16(jnp.stack(blocks, axis=0))                  # (groups, 9*gc, gc)
    p['ke_s'], p['ke_b'] = bn_fold(dim)

    # CoTLayer.embed: 1x1 (2d->d/2)+BN+ReLU, 1x1 (d/2 -> 9*d/8, bias), GroupNorm
    emb1 = nrm((2 * dim, dim // 2))
    p['emb1_wx'] = bf16(emb1[:dim])                              # applied to x
    p['emb1_wk'] = bf16(emb1[dim:])                              # applied to k
    p['emb1_s'], p['emb1_b'] = bn_fold(dim // 2)
    emb2_w = nrm((dim // 2, C9))
    emb2_b = nrm((C9,), 0.05)
    gn_g = 1.0 + 0.1 * jax.random.normal(nk(), (C9,), dtype=jnp.float32)
    gn_b = 0.1 * jax.random.normal(nk(), (C9,), dtype=jnp.float32)
    # original (wc-major) channel order, for the reference
    p['emb2_w'] = bf16(emb2_w)
    p['emb2_b'] = emb2_b
    p['gn_g'] = gn_g
    p['gn_b'] = gn_b
    # tap-major reordering (c_new = tap*WC + wc) for the kernels: no HBM transpose of w_gn
    perm = np.array([(c % WC) * 9 + (c // WC) for c in range(C9)])
    p['emb2_w_k'] = bf16(emb2_w[:, perm])
    p['emb2_b_k'] = emb2_b[perm]
    p['gn_g_k'] = gn_g[perm]
    p['gn_b_k'] = gn_b[perm]
    # group indicator in tap-major order: channel c_new belongs to group (c_new % WC)
    ge = (jnp.arange(C9)[:, None] % WC == jnp.arange(WC)[None, :]).astype(jnp.float32)
    p['gn_e'] = ge
    p['gn_et'] = ge.T

    # CoTLayer.conv1x1 + BN (value path; fused into the aggregation kernel)
    p['cv_w'] = bf16(nrm((dim, dim)))
    p['cv_s'], p['cv_b'] = bn_fold(dim)

    # CoTLayer.bn (after local_conv)
    p['bn_s'], p['bn_b'] = bn_fold(dim)

    # CoTLayer.se: Conv1x1(dim->attn_chs, bias)+BN+ReLU, Conv1x1(attn_chs->2*dim, bias)
    p['se1_w'] = bf16(nrm((dim, attn_chs)))
    se1_bias = nrm((attn_chs,), 0.05)
    s1, b1 = bn_fold(attn_chs)
    p['se1_s'] = s1
    p['se1_b'] = b1 + se1_bias * s1
    se2_w = nrm((attn_chs, 2 * dim))
    se2_b = nrm((2 * dim,), 0.05)
    p['se2_w'] = bf16(se2_w)                                     # original order (c*2 + r)
    p['se2_b'] = se2_b
    perm_se = np.array([c * 2 + r for r in range(2) for c in range(dim)])
    p['se2_w_k'] = bf16(se2_w[:, perm_se])                       # radix-major (r*dim + c)
    p['se2_b_k'] = se2_b[perm_se]

    # conv3 / bn3
    p['conv3_w'] = bf16(nrm((width, outplanes)))
    p['bn3_s'], p['bn3_b'] = bn_fold(outplanes)
    return p


if __name__ == "__main__":
    root = jax.random.PRNGKey(0)
    kx, kp = jax.random.split(root)

    # small config: inplanes = 4*planes so the identity residual applies (downsample=None)
    B, inplanes, H, W = 2, 32, 8, 8
    planes = 8                           # width = dim = 8, outplanes = 32
    x = 0.5 * jax.random.normal(kx, (B, inplanes, H, W), dtype=jnp.float32)
    params = init_params(kp, inplanes, planes)

    out = jax.block_until_ready(cot_bottleneck_forward(x, params))
    ref = jax.block_until_ready(reference_forward(x, params))
    np.testing.assert_allclose(np.asarray(out), np.asarray(ref), rtol=2e-2, atol=5e-3)
    print("KERNEL_OK")
</pallas_src>

<mosaic_0001>
module attributes {stable_mosaic.version = 11 : i64} {
  func.func @_pw_kernel(%arg0: i32, %arg1: memref<128x32xf32, #tpu.memory_space<vmem>>, %arg2: memref<32x8xbf16, #tpu.memory_space<vmem>>, %arg3: memref<1x8xf32, #tpu.memory_space<vmem>>, %arg4: memref<1x8xf32, #tpu.memory_space<vmem>>, %arg5: memref<128x8xbf16, #tpu.memory_space<vmem>>) attributes {dimension_semantics = [#tpu.dimension_semantics<parallel>], iteration_bounds = array<i64: 1>, scalar_prefetch = 0 : i64, scratch_operands = 0 : i64, tpu.core_type = #tpu.core_type<tc>, window_params = [{transform_indices = @transform_0, window_bounds = array<i64: 128, 32>}, {pipeline_mode = #tpu.pipeline_mode<synchronous>, transform_indices = @transform_1, window_bounds = array<i64: 32, 8>}, {pipeline_mode = #tpu.pipeline_mode<synchronous>, transform_indices = @transform_2, window_bounds = array<i64: 1, 8>}, {pipeline_mode = #tpu.pipeline_mode<synchronous>, transform_indices = @transform_3, window_bounds = array<i64: 1, 8>}, {transform_indices = @transform_4, window_bounds = array<i64: 128, 8>}]} {
    %c0 = arith.constant 0 : index
    %c0_0 = arith.constant 0 : index
    %0 = vector.load %arg1[%c0, %c0_0] : memref<128x32xf32, #tpu.memory_space<vmem>>, vector<128x32xf32>
    %1 = arith.truncf %0 : vector<128x32xf32> to vector<128x32xbf16>
    %c0_1 = arith.constant 0 : index
    %c0_2 = arith.constant 0 : index
    %2 = vector.load %arg2[%c0_1, %c0_2] : memref<32x8xbf16, #tpu.memory_space<vmem>>, vector<32x8xbf16>
    %cst = arith.constant dense<0.000000e+00> : vector<128x8xf32>
    %3 = tpu.matmul %1, %2, %cst {dimension_numbers = #tpu.dot_dimension_numbers<[1], [0], [0], [1], [0, 0, 1, 1], [], []>} : vector<128x32xbf16>, vector<32x8xbf16>, vector<128x8xf32> -> vector<128x8xf32>
    %c0_3 = arith.constant 0 : index
    %c0_4 = arith.constant 0 : index
    %4 = vector.load %arg3[%c0_3, %c0_4] : memref<1x8xf32, #tpu.memory_space<vmem>>, vector<1x8xf32>
    %5 = vector.broadcast %4 : vector<1x8xf32> to vector<128x8xf32>
    %6 = arith.mulf %3, %5 : vector<128x8xf32>
    %c0_5 = arith.constant 0 : index
    %c0_6 = arith.constant 0 : index
    %7 = vector.load %arg4[%c0_5, %c0_6] : memref<1x8xf32, #tpu.memory_space<vmem>>, vector<1x8xf32>
    %8 = vector.broadcast %7 : vector<1x8xf32> to vector<128x8xf32>
    %9 = arith.addf %6, %8 : vector<128x8xf32>
    %cst_7 = arith.constant 0.000000e+00 : f32
    %10 = vector.broadcast %cst_7 : f32 to vector<128x8xf32>
    %11 = arith.maximumf %9, %10 : vector<128x8xf32>
    %12 = arith.truncf %11 : vector<128x8xf32> to vector<128x8xbf16>
    %c0_8 = arith.constant 0 : index
    %c0_9 = arith.constant 0 : index
    %13 = vector.load %arg5[%c0_8, %c0_9] : memref<128x8xbf16, #tpu.memory_space<vmem>>, vector<128x8xbf16>
    tpu.vector_store %arg5[%c0_8, %c0_9], %12 {strides = array<i32>} : memref<128x8xbf16, #tpu.memory_space<vmem>>, vector<128x8xbf16>,
    return
  }
  func.func @transform_0(%arg0: i32) -> (i32, i32) {
    %c0_i32 = arith.constant 0 : i32
    %c0_i32_0 = arith.constant 0 : i32
    return %arg0, %c0_i32 : i32, i32
  }
  func.func @transform_1(%arg0: i32) -> (i32, i32) {
    %c0_i32 = arith.constant 0 : i32
    %c0_i32_0 = arith.constant 0 : i32
    %c0_i32_1 = arith.constant 0 : i32
    return %c0_i32, %c0_i32_0 : i32, i32
  }
  func.func @transform_2(%arg0: i32) -> (i32, i32) {
    %c0_i32 = arith.constant 0 : i32
    %c0_i32_0 = arith.constant 0 : i32
    %c0_i32_1 = arith.constant 0 : i32
    return %c0_i32, %c0_i32_0 : i32, i32
  }
  func.func @transform_3(%arg0: i32) -> (i32, i32) {
    %c0_i32 = arith.constant 0 : i32
    %c0_i32_0 = arith.constant 0 : i32
    %c0_i32_1 = arith.constant 0 : i32
    return %c0_i32, %c0_i32_0 : i32, i32
  }
  func.func @transform_4(%arg0: i32) -> (i32, i32) {
    %c0_i32 = arith.constant 0 : i32
    %c0_i32_0 = arith.constant 0 : i32
    return %arg0, %c0_i32 : i32, i32
  }
}

</mosaic_0001>

<llo_original>
// kernel: tpu_custom_call.1
$region0: #{tpu_custom_call.1}
  #allocation0 [shape = 'u32[]', space=smem, size = 0x4, offset = 0x4, fixed_abs, tag = 'smem constant byte address 0x4 - core index']
  #allocation1 [shape = 'u32[144,128]{1,0:T(1,128)}', space=vmem, size = 0x12000, scoped, tag = 'internal scratch']
  %s0 = inlined_call_operand.vmem [shape: f32[128,32], index: 0, kind: input, shape index: {}]
  %s1 = inlined_call_operand.vmem [shape: bf16[32,8], index: 1, kind: input, shape index: {}]
  %s2 = inlined_call_operand.vmem [shape: f32[1,8], index: 2, kind: input, shape index: {}]
  %s3 = inlined_call_operand.vmem [shape: f32[1,8], index: 3, kind: input, shape index: {}]
  %s4 = inlined_call_operand.vmem [shape: bf16[128,8], index: 4, kind: output, shape index: {}]
  %s5 = sld [smem:[#allocation0]]
  $region26: #{tpu_custom_call.1} parent=0
    _
  %s7 = ssub.s32 1, %s5
  %s8 = scalar_select 0, %s7, %s5
  // Predicated region
  $region2: #{tpu_custom_call.1} parent=0 // pred_check
    _
  $region3: #{tpu_custom_call.1} parent=0 // pred_check_branch
    %10 = sbr.rel (0) target = $region5
  $region4: #{tpu_custom_call.1} parent=0 // pred_region
    _
  $region5: #{tpu_custom_call.1} parent=0 // pred_fallthru
    _
  // Predicated region
  $region6: #{tpu_custom_call.1} parent=0 // pred_check
    _
  $region7: #{tpu_custom_call.1} parent=0 // pred_check_branch
    %12 = sbr.rel (0) target = $region9
  $region8: #{tpu_custom_call.1} parent=0 // pred_region
    _
  $region9: #{tpu_custom_call.1} parent=0 // pred_fallthru
    _
  // Predicated region
  $region10: #{tpu_custom_call.1} parent=0 // pred_check
    _
  $region11: #{tpu_custom_call.1} parent=0 // pred_check_branch
    %14 = sbr.rel (0) target = $region13
  $region12: #{tpu_custom_call.1} parent=0 // pred_region
    _
  $region13: #{tpu_custom_call.1} parent=0 // pred_fallthru
    _
  // Predicated region
  $region14: #{tpu_custom_call.1} parent=0 // pred_check
    _
  $region15: #{tpu_custom_call.1} parent=0 // pred_check_branch
    %16 = sbr.rel (0) target = $region17
  $region16: #{tpu_custom_call.1} parent=0 // pred_region
    _
  $region17: #{tpu_custom_call.1} parent=0 // pred_fallthru
    _
  %v18 = vld [vmem:[%s0] sm:$0xff]
  %v19 = vld [vmem:[%s0 + $0x8] sm:$0xff]
  %v20 = vld [vmem:[%s0 + $0x10] sm:$0xff]
  %v21 = vld [vmem:[%s0 + $0x18] sm:$0xff]
  %v22 = vld [vmem:[%s0 + $0x20] sm:$0xff]
  %v23 = vld [vmem:[%s0 + $0x28] sm:$0xff]
  %v24 = vld [vmem:[%s0 + $0x30] sm:$0xff]
  %v25 = vld [vmem:[%s0 + $0x38] sm:$0xff]
  %v26 = vld [vmem:[%s0 + $0x40] sm:$0xff]
  %v27 = vld [vmem:[%s0 + $0x48] sm:$0xff]
  %v28 = vld [vmem:[%s0 + $0x50] sm:$0xff]
  %v29 = vld [vmem:[%s0 + $0x58] sm:$0xff]
  %v30 = vld [vmem:[%s0 + $0x60] sm:$0xff]
  %v31 = vld [vmem:[%s0 + $0x68] sm:$0xff]
  %v32 = vld [vmem:[%s0 + $0x70] sm:$0xff]
  %v33 = vld [vmem:[%s0 + $0x78] sm:$0xff]
  %v34 = vpack.c.bf16 %v19, %v18
  %v35 = vpack.c.bf16 %v21, %v20
  %v36 = vpack.c.bf16 %v23, %v22
  %v37 = vpack.c.bf16 %v25, %v24
  %v38 = vpack.c.bf16 %v27, %v26
  %v39 = vpack.c.bf16 %v29, %v28
  %v40 = vpack.c.bf16 %v31, %v30
  %v41 = vpack.c.bf16 %v33, %v32
  %v42 = vld [vmem:[%s1] sm:$0xf]
  %v43 = vld [vmem:[%s1 + $0x4] sm:$0xf]
  %v44 = vld [vmem:[%s1 + $0x8] sm:$0xf]
  %v45 = vld [vmem:[%s1 + $0xc] sm:$0xf]
  %v50 = vunpack.c.l.b16 %v42
  %v51 = vunpack.c.l.b16 %v43
  %v52 = vunpack.c.l.b16 %v44
  %v53 = vunpack.c.l.b16 %v45
  %v54 = vpack.c.b16 %v51, %v50
  %v55 = vpack.c.b16 %v53, %v52
  %vm58 = vcmask 261120
  %v60 = vsel %vm58, %v34, 0
  %v63 = vsel %vm58, %v35, 0
  %v66 = vsel %vm58, %v36, 0
  %v69 = vsel %vm58, %v37, 0
  %v72 = vsel %vm58, %v38, 0
  %v75 = vsel %vm58, %v39, 0
  %v78 = vsel %vm58, %v40, 0
  %v81 = vsel %vm58, %v41, 0
  %83 = vmatprep.subr.bf16.mxu0 0
  %84 = vmatpush1.bf16.msra.mxu0 0
  %85 = vmatprep.subr.bf16.mxu0 0
  %86 = vmatpush1.bf16.msra.mxu0 0
  %87 = vmatprep.subr.bf16.mxu0 0
  %88 = vmatpush1.bf16.msra.mxu0 0
  %89 = vmatprep.subr.bf16.mxu0 0
  %90 = vmatpush1.bf16.msra.mxu0 0
  %91 = vmatprep.subr.bf16.mxu0 0
  %92 = vmatpush1.bf16.msra.mxu0 0
  %93 = vmatprep.subr.bf16.mxu0 0
  %94 = vmatpush1.bf16.msra.mxu0 0
  %95 = vmatprep.subr.bf16.mxu0 0
  %96 = vmatpush1.bf16.msra.mxu0 %v55
  %97 = vmatprep.subr.bf16.mxu0 0
  %98 = vmatpush1.bf16.msra.mxu0 %v54
  %99 = vmatprep.subr.bf16.mxu0 0
  %100 = vmatpush2.bf16.msra.mxu0 0
  %101 = vmatprep.subr.bf16.mxu0 0
  %102 = vmatpush2.bf16.msra.mxu0 0
  %103 = vmatprep.subr.bf16.mxu0 0
  %104 = vmatpush2.bf16.msra.mxu0 0
  %105 = vmatprep.subr.bf16.mxu0 0
  %106 = vmatpush2.bf16.msra.mxu0 0
  %107 = vmatprep.subr.bf16.mxu0 0
  %108 = vmatpush2.bf16.msra.mxu0 0
  %109 = vmatprep.subr.bf16.mxu0 0
  %110 = vmatpush2.bf16.msra.mxu0 0
  %111 = vmatprep.subr.bf16.mxu0 0
  %112 = vmatpush2.bf16.msra.mxu0 0
  %113 = vmatprep.subr.bf16.mxu0 0
  %114 = vmatpush2.bf16.msra.mxu0 0
  %115 = vmatprep.mubr.bf16.mxu0 0
  %116 = vmatmul.mubr.bf16.gmra.mxu0 %v60
  %v117 = vpop.f32.mrf.mxu0
  %v118 = vadd.f32 0.0, %v117
  %v119 = vpop.f32.mrf.mxu0
  %v120 = vpop.f32.mrf.mxu0
  %v121 = vadd.f32 0.0, %v120
  %v122 = vpop.f32.mrf.mxu0
  %123 = vmatprep.mubr.bf16.mxu0 0
  %124 = vmatmul.mubr.bf16.gmra.mxu0 %v63
  %v125 = vpop.f32.mrf.mxu0
  %v126 = vadd.f32 0.0, %v125
  %v127 = vpop.f32.mrf.mxu0
  %v128 = vpop.f32.mrf.mxu0
  %v129 = vadd.f32 0.0, %v128
  %v130 = vpop.f32.mrf.mxu0
  %131 = vmatprep.mubr.bf16.mxu0 0
  %132 = vmatmul.mubr.bf16.gmra.mxu0 %v66
  %v133 = vpop.f32.mrf.mxu0
  %v134 = vadd.f32 0.0, %v133
  %v135 = vpop.f32.mrf.mxu0
  %v136 = vpop.f32.mrf.mxu0
  %v137 = vadd.f32 0.0, %v136
  %v138 = vpop.f32.mrf.mxu0
  %139 = vmatprep.mubr.bf16.mxu0 0
  %140 = vmatmul.mubr.bf16.gmra.mxu0 %v69
  %v141 = vpop.f32.mrf.mxu0
  %v142 = vadd.f32 0.0, %v141
  %v143 = vpop.f32.mrf.mxu0
  %v144 = vpop.f32.mrf.mxu0
  %v145 = vadd.f32 0.0, %v144
  %v146 = vpop.f32.mrf.mxu0
  %147 = vmatprep.mubr.bf16.mxu0 0
  %148 = vmatmul.mubr.bf16.gmra.mxu0 %v72
  %v149 = vpop.f32.mrf.mxu0
  %v150 = vadd.f32 0.0, %v149
  %v151 = vpop.f32.mrf.mxu0
  %v152 = vpop.f32.mrf.mxu0
  %v153 = vadd.f32 0.0, %v152
  %v154 = vpop.f32.mrf.mxu0
  %155 = vmatprep.mubr.bf16.mxu0 0
  %156 = vmatmul.mubr.bf16.gmra.mxu0 %v75
  %v157 = vpop.f32.mrf.mxu0
  %v158 = vadd.f32 0.0, %v157
  %v159 = vpop.f32.mrf.mxu0
  %v160 = vpop.f32.mrf.mxu0
  %v161 = vadd.f32 0.0, %v160
  %v162 = vpop.f32.mrf.mxu0
  %163 = vmatprep.mubr.bf16.mxu0 0
  %164 = vmatmul.mubr.bf16.gmra.mxu0 %v78
  %v165 = vpop.f32.mrf.mxu0
  %v166 = vadd.f32 0.0, %v165
  %v167 = vpop.f32.mrf.mxu0
  %v168 = vpop.f32.mrf.mxu0
  %v169 = vadd.f32 0.0, %v168
  %v170 = vpop.f32.mrf.mxu0
  %171 = vmatprep.mubr.bf16.mxu0 0
  %172 = vmatmul.mubr.bf16.gmra.mxu0 %v81
  %v173 = vpop.f32.mrf.mxu0
  %v174 = vadd.f32 0.0, %v173
  %v175 = vpop.f32.mrf.mxu0
  %v176 = vpop.f32.mrf.mxu0
  %v177 = vadd.f32 0.0, %v176
  %v178 = vpop.f32.mrf.mxu0
  %179 = vdwg.mxu0
  %v180 = vld [vmem:[%s2] sm:$0x1]
  %v182 = vlaneseq
  %v183 = vshrl.u32 %v182, 7
  %v184 = vsub.s32 0, %v183
  %v185 = vrot.slane %v180, %v184
  %v187 = vmul.f32 %v118, %v185
  %v188 = vmul.f32 %v121, %v185
  %v189 = vmul.f32 %v126, %v185
  %v190 = vmul.f32 %v129, %v185
  %v191 = vmul.f32 %v134, %v185
  %v192 = vmul.f32 %v137, %v185
  %v193 = vmul.f32 %v142, %v185
  %v194 = vmul.f32 %v145, %v185
  %v195 = vmul.f32 %v150, %v185
  %v196 = vmul.f32 %v153, %v185
  %v197 = vmul.f32 %v158, %v185
  %v198 = vmul.f32 %v161, %v185
  %v199 = vmul.f32 %v166, %v185
  %v200 = vmul.f32 %v169, %v185
  %v201 = vmul.f32 %v174, %v185
  %v202 = vmul.f32 %v177, %v185
  %v203 = vld [vmem:[%s3] sm:$0x1]
  %v205 = vlaneseq
  %v206 = vshrl.u32 %v205, 7
  %v207 = vsub.s32 0, %v206
  %v208 = vrot.slane %v203, %v207
  %v210 = vadd.f32 %v187, %v208
  %v211 = vadd.f32 %v188, %v208
  %v212 = vadd.f32 %v189, %v208
  %v213 = vadd.f32 %v190, %v208
  %v214 = vadd.f32 %v191, %v208
  %v215 = vadd.f32 %v192, %v208
  %v216 = vadd.f32 %v193, %v208
  %v217 = vadd.f32 %v194, %v208
  %v218 = vadd.f32 %v195, %v208
  %v219 = vadd.f32 %v196, %v208
  %v220 = vadd.f32 %v197, %v208
  %v221 = vadd.f32 %v198, %v208
  %v222 = vadd.f32 %v199, %v208
  %v223 = vadd.f32 %v200, %v208
  %v224 = vadd.f32 %v201, %v208
  %v225 = vadd.f32 %v202, %v208
  %v226 = vmax.f32 %v210, 0.0
  %v227 = vmax.f32 %v211, 0.0
  %v228 = vmax.f32 %v212, 0.0
  %v229 = vmax.f32 %v213, 0.0
  %v230 = vmax.f32 %v214, 0.0
  %v231 = vmax.f32 %v215, 0.0
  %v232 = vmax.f32 %v216, 0.0
  %v233 = vmax.f32 %v217, 0.0
  %v234 = vmax.f32 %v218, 0.0
  %v235 = vmax.f32 %v219, 0.0
  %v236 = vmax.f32 %v220, 0.0
  %v237 = vmax.f32 %v221, 0.0
  %v238 = vmax.f32 %v222, 0.0
  %v239 = vmax.f32 %v223, 0.0
  %v240 = vmax.f32 %v224, 0.0
  %v241 = vmax.f32 %v225, 0.0
  %v242 = vpack.c.bf16 %v227, %v226
  %v243 = vpack.c.bf16 %v229, %v228
  %v244 = vpack.c.bf16 %v231, %v230
  %v245 = vpack.c.bf16 %v233, %v232
  %v246 = vpack.c.bf16 %v235, %v234
  %v247 = vpack.c.bf16 %v237, %v236
  %v248 = vpack.c.bf16 %v239, %v238
  %v249 = vpack.c.bf16 %v241, %v240
  %v258 = vunpack.c.l.b16 %v242
  %v259 = vunpack.c.h.b16 %v242
  %v260 = vunpack.c.l.b16 %v243
  %v261 = vunpack.c.h.b16 %v243
  %v262 = vunpack.c.l.b16 %v244
  %v263 = vunpack.c.h.b16 %v244
  %v264 = vunpack.c.l.b16 %v245
  %v265 = vunpack.c.h.b16 %v245
  %v266 = vunpack.c.l.b16 %v246
  %v267 = vunpack.c.h.b16 %v246
  %v268 = vunpack.c.l.b16 %v247
  %v269 = vunpack.c.h.b16 %v247
  %v270 = vunpack.c.l.b16 %v248
  %v271 = vunpack.c.h.b16 %v248
  %v272 = vunpack.c.l.b16 %v249
  %v273 = vunpack.c.h.b16 %v249
  %v274 = vpack.c.b16 %v258, %v258
  %v275 = vpack.c.b16 %v259, %v259
  %v276 = vpack.c.b16 %v260, %v260
  %v277 = vpack.c.b16 %v261, %v261
  %v278 = vpack.c.b16 %v262, %v262
  %v279 = vpack.c.b16 %v263, %v263
  %v280 = vpack.c.b16 %v264, %v264
  %v281 = vpack.c.b16 %v265, %v265
  %v282 = vpack.c.b16 %v266, %v266
  %v283 = vpack.c.b16 %v267, %v267
  %v284 = vpack.c.b16 %v268, %v268
  %v285 = vpack.c.b16 %v269, %v269
  %v286 = vpack.c.b16 %v270, %v270
  %v287 = vpack.c.b16 %v271, %v271
  %v288 = vpack.c.b16 %v272, %v272
  %v289 = vpack.c.b16 %v273, %v273
  %vm306 = vcmask 60416
  %307 = vst.msk [vmem:[%s4] sm:$0xf] %vm306, %v274
  %308 = vst.msk [vmem:[%s4 + $0x4] sm:$0xf] %vm306, %v275
  %309 = vst.msk [vmem:[%s4 + $0x8] sm:$0xf] %vm306, %v276
  %310 = vst.msk [vmem:[%s4 + $0xc] sm:$0xf] %vm306, %v277
  %311 = vst.msk [vmem:[%s4 + $0x10] sm:$0xf] %vm306, %v278
  %312 = vst.msk [vmem:[%s4 + $0x14] sm:$0xf] %vm306, %v279
  %313 = vst.msk [vmem:[%s4 + $0x18] sm:$0xf] %vm306, %v280
  %314 = vst.msk [vmem:[%s4 + $0x1c] sm:$0xf] %vm306, %v281
  %315 = vst.msk [vmem:[%s4 + $0x20] sm:$0xf] %vm306, %v282
  %316 = vst.msk [vmem:[%s4 + $0x24] sm:$0xf] %vm306, %v283
  %317 = vst.msk [vmem:[%s4 + $0x28] sm:$0xf] %vm306, %v284
  %318 = vst.msk [vmem:[%s4 + $0x2c] sm:$0xf] %vm306, %v285
  %319 = vst.msk [vmem:[%s4 + $0x30] sm:$0xf] %vm306, %v286
  %320 = vst.msk [vmem:[%s4 + $0x34] sm:$0xf] %vm306, %v287
  %321 = vst.msk [vmem:[%s4 + $0x38] sm:$0xf] %vm306, %v288
  %322 = vst.msk [vmem:[%s4 + $0x3c] sm:$0xf] %vm306, %v289
  // Predicated region
  $region18: #{tpu_custom_call.1} parent=0 // pred_check
    _
  $region19: #{tpu_custom_call.1} parent=0 // pred_check_branch
    %324 = sbr.rel (0) target = $region21
  $region20: #{tpu_custom_call.1} parent=0 // pred_region
    _
  $region21: #{tpu_custom_call.1} parent=0 // pred_fallthru
    _
  // Predicated region
  $region22: #{tpu_custom_call.1} parent=0 // pred_check
    _
  $region23: #{tpu_custom_call.1} parent=0 // pred_check_branch
    %326 = sbr.rel (0) target = $region25
  $region24: #{tpu_custom_call.1} parent=0 // pred_region
    _
  $region25: #{tpu_custom_call.1} parent=0 // pred_fallthru
    _

</llo_original>
